<compile_context>
chip_gen: v5e
topology: v5e:2x2
jax: 0.10.0
libtpu: 0.0.40
codegen_flags: <defaults>
</compile_context>

<pallas_src>
import functools

import jax
import jax.numpy as jnp
from jax import lax
from jax.experimental import pallas as pl
from jax.experimental.pallas import tpu as pltpu


_NUM_SPLITS = 2  # leading "parallel" grid axis -> feeds both TensorCores on v7x


def _round_up(x, m):
    return ((x + m - 1) // m) * m


def _g2_kernel(row_sm, col_sm, row_v_ref, x_hbm, out_ref,
               x_vmem, d_buf, sums_ref, dma_sem,
               *, p, e_tile, n_pad, n_inner):
    c = pl.program_id(0)          # core-split index
    t = pl.program_id(1)          # edge-tile index within this split

    @pl.when(t == 0)
    def _prologue():
        # One HBM->VMEM copy of X per core; the single scratch copy stays
        # resident across every edge tile of this split (no double buffer).
        cp = pltpu.make_async_copy(x_hbm, x_vmem, dma_sem)
        cp.start()
        cp.wait()
        sums_ref[...] = jnp.zeros_like(sums_ref)

    base = (c * n_inner + t) * e_tile

    # O(E*D) gather: indices live in SMEM (scalar prefetch); each edge does two
    # dynamic-slice row loads from the resident VMEM X.  Padded edges carry
    # index 0 -> X[0] - X[0] = 0 (harmless, and masked out of the scatter).
    def gather_body(e, carry):
        r = row_sm[base + e]
        q = col_sm[base + e]
        d_buf[pl.ds(e, 1), :] = x_vmem[pl.ds(r, 1), :] - x_vmem[pl.ds(q, 1), :]
        return carry

    lax.fori_loop(0, e_tile, gather_body, 0)

    d = d_buf[...]                                    # (e_tile, d_pad)
    if p == 2.0:
        pe = d * d                                    # no abs needed for p == 2
    elif float(p) == int(p) and int(p) >= 1:
        a = jnp.abs(d)
        pe = a
        for _ in range(int(p) - 1):                   # VALU muls, no EUP pow
            pe = pe * a
    else:
        pe = jnp.abs(d) ** p                          # general p (base >= 0)
    diff = jnp.sum(pe, axis=-1, keepdims=True)        # (e_tile, 1) per-edge energy

    # Lane-dense scatter-add of the per-edge energies onto their source node
    # (sums only — counts were hoisted to the wrapper).  Padded edges have
    # row == -1 and match no node id.
    row = row_v_ref[...]                               # (e_tile, 1) int32
    node_ids = lax.broadcasted_iota(jnp.int32, (e_tile, n_pad), 1)
    m_row = (row == node_ids).astype(jnp.float32)
    sums_ref[...] += jnp.sum(m_row * diff, axis=0, keepdims=True)

    @pl.when(t == n_inner - 1)
    def _epilogue():
        out_ref[...] = sums_ref[...]                   # this split's partial sums


def _vmem_budget_bytes():
    """Generation-aware scoped-VMEM budget: ~3/4 of physical capacity.

    ~96 MiB on v5e/v6e (128 MiB physical), ~48 MiB on v7x (64 MiB physical).
    """
    try:
        cap = int(pltpu.get_tpu_info().vmem_capacity_bytes)
    except Exception:
        cap = 64 * 1024 * 1024
    return cap * 3 // 4


def _derive_edge_tile(E, n_pad, d_pad, budget, cap):
    """Largest 128-multiple edge tile whose per-tile VMEM fits the budget."""
    fixed = n_pad * d_pad * 4                 # resident X copy (single buffer)
    fixed += 4 * 8 * n_pad * 4                # sums scratch + output block buffers
    per_edge = d_pad * 4                      # gathered-difference buffer row
    per_edge += 2 * 128 * 4                   # double-buffered (e_tile, 1) row tile
    per_edge += 3 * n_pad * 4                 # scatter-mask temporaries (iota/mask/prod)
    avail = budget - fixed - (4 << 20)        # slack for compiler temporaries
    e_tile = 128
    if avail > 0:
        e_tile = max(128, min(cap, (avail // per_edge) // 128 * 128))
    return int(min(e_tile, _round_up(max(E, 1), 128)))


def g2_forward(X, edge_index, conv_weight=None, conv_bias=None, *, p=2.0,
               edge_tile_cap=2048):
    """gg = tanh(scatter_mean(sum_d |X[row] - X[col]|^p, row, n_nodes)).

    conv_weight / conv_bias are accepted for interface parity with the PyTorch
    module but ignored: X_agg = ReLU(GCNConv(X)) never affects the returned gg.
    """
    del conv_weight, conv_bias  # dead branch in the reference forward

    N, D = X.shape
    E = int(edge_index.shape[1])

    n_pad = _round_up(max(N, 1), 128)          # lane-dense node axis
    d_pad = _round_up(max(D, 1), 128)

    budget = _vmem_budget_bytes()
    e_tile = _derive_edge_tile(E, n_pad, d_pad, budget, edge_tile_cap)

    tiles = max(1, pl.cdiv(max(E, 1), e_tile))
    total_tiles = _round_up(tiles, _NUM_SPLITS)
    n_inner = total_tiles // _NUM_SPLITS
    e_total = total_tiles * e_tile

    Xp = jnp.zeros((n_pad, d_pad), jnp.float32).at[:N, :D].set(X.astype(jnp.float32))

    row = edge_index[0].astype(jnp.int32)
    col = edge_index[1].astype(jnp.int32)
    # SMEM copies (gather path): pad with 0 so padded edges do harmless in-bounds loads.
    row_sm = jnp.zeros((e_total,), jnp.int32).at[:E].set(row)
    col_sm = jnp.zeros((e_total,), jnp.int32).at[:E].set(col)
    # VMEM copy (scatter mask): pad with -1 so padded edges match no node.
    row_v = jnp.full((e_total, 1), -1, jnp.int32).at[:E, 0].set(row)

    kernel = functools.partial(_g2_kernel, p=p, e_tile=e_tile,
                               n_pad=n_pad, n_inner=n_inner)

    partial = pl.pallas_call(
        kernel,
        out_shape=jax.ShapeDtypeStruct((1, _NUM_SPLITS * n_pad), jnp.float32),
        grid_spec=pltpu.PrefetchScalarGridSpec(
            num_scalar_prefetch=2,                         # row_sm, col_sm -> SMEM
            grid=(_NUM_SPLITS, n_inner),
            in_specs=[
                pl.BlockSpec((e_tile, 1), lambda c, t, *_: (c * n_inner + t, 0)),
                pl.BlockSpec(memory_space=pl.ANY),         # X stays in HBM; copied once/core
            ],
            out_specs=pl.BlockSpec((1, n_pad), lambda c, t, *_: (0, c)),
            scratch_shapes=[
                pltpu.VMEM((n_pad, d_pad), jnp.float32),   # resident X (single buffer)
                pltpu.VMEM((e_tile, d_pad), jnp.float32),  # gathered X[row]-X[col]
                pltpu.VMEM((1, n_pad), jnp.float32),       # per-node partial sums
                pltpu.SemaphoreType.DMA,                   # X-copy completion
            ],
        ),
        compiler_params=pltpu.CompilerParams(
            dimension_semantics=("parallel", "arbitrary"),  # core split x edge tiles
            vmem_limit_bytes=budget,
        ),
    )(row_sm, col_sm, row_v, Xp)

    # Cheap O(N) epilogue in the wrapper (review: "combine in the wrapper"):
    # merge the per-core partials, divide by the hoisted out-degree, tanh.
    sums = jnp.sum(partial.reshape(_NUM_SPLITS, n_pad), axis=0)[:N]
    deg = jnp.zeros((N,), jnp.float32).at[row].add(1.0)
    mean = jnp.where(deg > 0, sums / jnp.maximum(deg, 1.0), 0.0)
    # TODO(synk): for graphs where X (N*D f32) exceeds the VMEM budget or the
    # prefetched index arrays exceed SMEM, switch the gather to a manual
    # double-buffered DMA gather from HBM (memory_space=pl.ANY per-row copies)
    # and tile the index arrays through SMEM-blocked inputs.
    return jnp.tanh(mean)


def _reference(X, edge_index, p=2.0):
    """Pure-JAX reference for correctness checking."""
    N = X.shape[0]
    row, col = edge_index[0], edge_index[1]
    diff = jnp.sum(jnp.abs(X[row] - X[col]) ** p, axis=-1)
    sums = jnp.zeros((N,), jnp.float32).at[row].add(diff)
    counts = jnp.zeros((N,), jnp.float32).at[row].add(1.0)
    mean = jnp.where(counts > 0, sums / jnp.maximum(counts, 1.0), 0.0)
    return jnp.tanh(mean)


if __name__ == "__main__":
    key = jax.random.PRNGKey(0)
    k_x, k_e1, k_e2, k_w = jax.random.split(key, 4)

    N_NODES, D_FEAT, HIDDEN, N_EDGES = 16, 32, 32, 64

    X = jax.random.normal(k_x, (N_NODES, D_FEAT), dtype=jnp.float32)
    row = jax.random.randint(k_e1, (N_EDGES,), 0, N_NODES, dtype=jnp.int32)
    col = jax.random.randint(k_e2, (N_EDGES,), 0, N_NODES, dtype=jnp.int32)
    edge_index = jnp.stack([row, col], axis=0)

    # GCNConv parameters exist on the module, but its output never reaches gg.
    W = jax.random.normal(k_w, (D_FEAT, HIDDEN), dtype=jnp.float32) / jnp.sqrt(D_FEAT)
    b = jnp.zeros((HIDDEN,), jnp.float32)

    gg = jax.block_until_ready(g2_forward(X, edge_index, W, b, p=2.0))
    gg_ref = _reference(X, edge_index, p=2.0)

    assert gg.shape == (N_NODES,)
    assert jnp.allclose(gg, gg_ref, atol=1e-5, rtol=1e-5), (gg, gg_ref)
    print("KERNEL_OK")
</pallas_src>

<mosaic_0001>
module attributes {stable_mosaic.version = 11 : i64} {
  func.func @_g2_kernel(%arg0: i32, %arg1: i32, %arg2: memref<256xi32, #tpu.memory_space<smem>>, %arg3: memref<256xi32, #tpu.memory_space<smem>>, %arg4: memref<128x1xi32, #tpu.memory_space<vmem>>, %arg5: memref<128x128xf32, #tpu.memory_space<any>>, %arg6: memref<1x128xf32, #tpu.memory_space<vmem>>, %arg7: memref<128x128xf32, #tpu.memory_space<vmem>>, %arg8: memref<128x128xf32, #tpu.memory_space<vmem>>, %arg9: memref<1x128xf32, #tpu.memory_space<vmem>>, %arg10: memref<!tpu.dma_semaphore, #tpu.memory_space<semaphore_mem>>) attributes {dimension_semantics = [#tpu.dimension_semantics<parallel>, #tpu.dimension_semantics<arbitrary>], iteration_bounds = array<i64: 2, 1>, scalar_prefetch = 2 : i64, scratch_operands = 4 : i64, tpu.core_type = #tpu.core_type<tc>, window_params = [{transform_indices = @transform_0, window_bounds = array<i64: 128, 1>}, {}, {transform_indices = @transform_2, window_bounds = array<i64: 1, 128>}]} {
    %c0_i32 = arith.constant 0 : i32
    %0 = arith.cmpi eq, %arg1, %c0_i32 : i32
    %1 = arith.extui %0 : i1 to i32
    %c0_i32_0 = arith.constant 0 : i32
    %2 = arith.cmpi ne, %1, %c0_i32_0 : i32
    scf.if %2 {
      tpu.enqueue_dma source(%arg5 : memref<128x128xf32, #tpu.memory_space<any>>) target(%arg7 : memref<128x128xf32, #tpu.memory_space<vmem>>) target_semaphore(%arg10 : memref<!tpu.dma_semaphore, #tpu.memory_space<semaphore_mem>>)
      tpu.wait_dma2 semaphore(%arg10 : memref<!tpu.dma_semaphore, #tpu.memory_space<semaphore_mem>>) src(%arg5 : memref<128x128xf32, #tpu.memory_space<any>>) dst(%arg7 : memref<128x128xf32, #tpu.memory_space<vmem>>)
      %cst_15 = arith.constant 0.000000e+00 : f32
      %27 = vector.broadcast %cst_15 : f32 to vector<1x128xf32>
      %c0_16 = arith.constant 0 : index
      %c0_17 = arith.constant 0 : index
      %28 = vector.load %arg9[%c0_16, %c0_17] : memref<1x128xf32, #tpu.memory_space<vmem>>, vector<1x128xf32>
      tpu.vector_store %arg9[%c0_16, %c0_17], %27 {strides = array<i32>} : memref<1x128xf32, #tpu.memory_space<vmem>>, vector<1x128xf32>,
    } else {
    }
    %c1_i32 = arith.constant 1 : i32
    %3 = arith.muli %arg0, %c1_i32 : i32
    %4 = arith.addi %3, %arg1 : i32
    %c128_i32 = arith.constant 128 : i32
    %5 = arith.muli %4, %c128_i32 : i32
    %c0_i32_1 = arith.constant 0 : i32
    %c128_i32_2 = arith.constant 128 : i32
    %6 = arith.addi %c0_i32_1, %c128_i32_2 : i32
    %c1_i32_3 = arith.constant 1 : i32
    scf.for %arg11 = %c0_i32_1 to %6 step %c1_i32_3  : i32 {
      %27 = arith.addi %5, %arg11 : i32
      %28 = arith.index_cast %27 : i32 to index
      %29 = memref.load %arg2[%28] : memref<256xi32, #tpu.memory_space<smem>>
      %30 = arith.addi %5, %arg11 : i32
      %31 = arith.index_cast %30 : i32 to index
      %32 = memref.load %arg3[%31] : memref<256xi32, #tpu.memory_space<smem>>
      %33 = arith.index_cast %29 : i32 to index
      %c0_15 = arith.constant 0 : index
      %34 = vector.load %arg7[%33, %c0_15] : memref<128x128xf32, #tpu.memory_space<vmem>>, vector<1x128xf32>
      %35 = arith.index_cast %32 : i32 to index
      %c0_16 = arith.constant 0 : index
      %36 = vector.load %arg7[%35, %c0_16] : memref<128x128xf32, #tpu.memory_space<vmem>>, vector<1x128xf32>
      %37 = arith.subf %34, %36 : vector<1x128xf32>
      %38 = arith.index_cast %arg11 : i32 to index
      %c0_17 = arith.constant 0 : index
      %39 = vector.load %arg8[%38, %c0_17] : memref<128x128xf32, #tpu.memory_space<vmem>>, vector<1x128xf32>
      tpu.vector_store %arg8[%38, %c0_17], %37 {strides = array<i32>} : memref<128x128xf32, #tpu.memory_space<vmem>>, vector<1x128xf32>,
    }
    %c128_i32_4 = arith.constant 128 : i32
    %c0 = arith.constant 0 : index
    %c0_5 = arith.constant 0 : index
    %7 = vector.load %arg8[%c0, %c0_5] : memref<128x128xf32, #tpu.memory_space<vmem>>, vector<128x128xf32>
    %8 = arith.mulf %7, %7 : vector<128x128xf32>
    %cst = arith.constant dense<0.000000e+00> : vector<128xf32>
    %9 = vector.multi_reduction <add>, %8, %cst [1] : vector<128x128xf32> to vector<128xf32>
    %10 = vector.shape_cast %9 : vector<128xf32> to vector<128x1xf32>
    %c0_6 = arith.constant 0 : index
    %c0_7 = arith.constant 0 : index
    %11 = vector.load %arg4[%c0_6, %c0_7] : memref<128x1xi32, #tpu.memory_space<vmem>>, vector<128x1xi32>
    %12 = tpu.iota {dimensions = array<i32: 1>} : vector<128x128xi32>
    %13 = vector.broadcast %11 : vector<128x1xi32> to vector<128x128xi32>
    %14 = arith.cmpi eq, %13, %12 : vector<128x128xi32>
    %15 = arith.extui %14 : vector<128x128xi1> to vector<128x128xi32>
    %16 = arith.sitofp %15 : vector<128x128xi32> to vector<128x128xf32>
    %c0_8 = arith.constant 0 : index
    %c0_9 = arith.constant 0 : index
    %17 = vector.load %arg9[%c0_8, %c0_9] : memref<1x128xf32, #tpu.memory_space<vmem>>, vector<1x128xf32>
    %18 = vector.broadcast %10 : vector<128x1xf32> to vector<128x128xf32>
    %19 = arith.mulf %16, %18 : vector<128x128xf32>
    %cst_10 = arith.constant dense<0.000000e+00> : vector<128xf32>
    %20 = vector.multi_reduction <add>, %19, %cst_10 [0] : vector<128x128xf32> to vector<128xf32>
    %21 = vector.shape_cast %20 : vector<128xf32> to vector<1x128xf32>
    %22 = arith.addf %17, %21 : vector<1x128xf32>
    %c0_11 = arith.constant 0 : index
    %c0_12 = arith.constant 0 : index
    %23 = vector.load %arg9[%c0_11, %c0_12] : memref<1x128xf32, #tpu.memory_space<vmem>>, vector<1x128xf32>
    tpu.vector_store %arg9[%c0_11, %c0_12], %22 {strides = array<i32>} : memref<1x128xf32, #tpu.memory_space<vmem>>, vector<1x128xf32>,
    %c0_i32_13 = arith.constant 0 : i32
    %24 = arith.cmpi eq, %arg1, %c0_i32_13 : i32
    %25 = arith.extui %24 : i1 to i32
    %c0_i32_14 = arith.constant 0 : i32
    %26 = arith.cmpi ne, %25, %c0_i32_14 : i32
    scf.if %26 {
      %c0_15 = arith.constant 0 : index
      %c0_16 = arith.constant 0 : index
      %27 = vector.load %arg9[%c0_15, %c0_16] : memref<1x128xf32, #tpu.memory_space<vmem>>, vector<1x128xf32>
      %c0_17 = arith.constant 0 : index
      %c0_18 = arith.constant 0 : index
      %28 = vector.load %arg6[%c0_17, %c0_18] : memref<1x128xf32, #tpu.memory_space<vmem>>, vector<1x128xf32>
      tpu.vector_store %arg6[%c0_17, %c0_18], %27 {strides = array<i32>} : memref<1x128xf32, #tpu.memory_space<vmem>>, vector<1x128xf32>,
    } else {
    }
    return
  }
  func.func @transform_0(%arg0: i32, %arg1: i32, %arg2: memref<256xi32, #tpu.memory_space<smem>>, %arg3: memref<256xi32, #tpu.memory_space<smem>>) -> (i32, i32) {
    %c1_i32 = arith.constant 1 : i32
    %0 = arith.muli %arg0, %c1_i32 : i32
    %1 = arith.addi %0, %arg1 : i32
    %c0_i32 = arith.constant 0 : i32
    %c0_i32_0 = arith.constant 0 : i32
    return %1, %c0_i32 : i32, i32
  }
  func.func @transform_2(%arg0: i32, %arg1: i32, %arg2: memref<256xi32, #tpu.memory_space<smem>>, %arg3: memref<256xi32, #tpu.memory_space<smem>>) -> (i32, i32) {
    %c0_i32 = arith.constant 0 : i32
    %c0_i32_0 = arith.constant 0 : i32
    return %c0_i32, %arg0 : i32, i32
  }
}

</mosaic_0001>

<llo_original>
// kernel: tpu_custom_call.1
$region0: #{tpu_custom_call.1}
  #allocation0 [shape = 'u32[]', space=smem, size = 0x4, offset = 0x4, fixed_abs, tag = 'smem constant byte address 0x4 - core index']
  #allocation1 [shape = 'u32[72,128]{1,0:T(1,128)}', space=vmem, size = 0x9000, scoped, tag = 'internal scratch']
  #allocation2 [shape = 'f32[128,128]{1,0:T(8,128)}', space=vmem, size = 0x10000, scoped, tag = 'scratch operand']
  #allocation3 [shape = 'f32[128,128]{1,0:T(8,128)}', space=vmem, size = 0x10000, scoped, tag = 'scratch operand']
  #allocation4 [shape = 'f32[1,128]{1,0:T(1,128)}', space=vmem, size = 0x200, scoped, tag = 'scratch operand']
  #allocation5 [shape = 's32[1]{0}', space=sflag, size = 0x4, scoped, tag = 'scratch operand']
  #allocation6 [shape = 's32[1]{0}', space=sflag, size = 0x4, scoped, tag = 'scoped memory for tpu_custom_call.1']
  #allocation7 [shape = 'u8[1024]{0}', space=smem, size = 0x400, scoped, tag = 'prefetched SMEM operand 0']
  #allocation8 [shape = 'u8[1024]{0}', space=smem, size = 0x400, scoped, tag = 'prefetched SMEM operand 1']
  #allocation11 [shape = 's32[]', space=sflag, size = 0x4, offset = 0, fixed_abs, tag = 'sflag constant byte address 0x0 - dummy sync flag']
  %s0 = inlined_call_operand.vmem [shape: s32[256], index: 0, kind: input, shape index: {}]
  %s1 = inlined_call_operand.vmem [shape: s32[256], index: 1, kind: input, shape index: {}]
  %s2 = inlined_call_operand.vmem [shape: s32[256,1], index: 2, kind: input, shape index: {}]
  %s3 = inlined_call_operand.vmem [shape: f32[128,128], index: 3, kind: input, shape index: {}]
  %s4 = inlined_call_operand.hbm [shape: f32[1,256], index: 4, kind: output, shape index: {}]
  %s5 = sld [smem:[#allocation0]]
  $region71: #{tpu_custom_call.1} parent=0
    _
  %s7 = ssub.s32 1, %s5
  %s8 = scalar_select 0, %s7, %s5
  %s10 = sshll.u32 %s0, 4
  %s11 = int_to_ptr.vmem [resolvable:$true] %s10
  %13 = dma.vmem_to_smem %s11, 32, [#allocation7], [#allocation6]
  %s15 = sshll.u32 %s1, 4
  %s16 = int_to_ptr.vmem [resolvable:$true] %s15
  %18 = dma.vmem_to_smem %s16, 32, [#allocation8], [#allocation6]
  %20 = dma.done [#allocation6], 64
  %21 = sfence
  $region1: #{tpu_custom_call.1} parent=0
    #allocation9 [shape = 'u8[1024]{0}', space=vmem, size = 0x400, scoped, tag = 'output window, operand 0']
    #allocation10 [shape = 's32[2]{0}', space=sflag, size = 0x8, scoped, tag = 'scoped memory for tpu_custom_call.1']
    %22 = vsyncpa [#allocation10], 0
    %s23 = scalar_lea.sflag [#allocation10], 1
    %24 = vsyncpa %s23, 0
    loop: start=0, step=1, limit=4
    $region2: #{tpu_custom_call.1} parent=1 // loop_pre_header
      _
    $region3: #{tpu_custom_call.1} parent=1 // loop_header
      %s26 = sphi 0, %s30
      %p27 = scmp.ge.s32.totalorder %s26, 4
      %s33 = sphi 0, %s45
      %s34 = sphi 0, %s41
      %s35 = sphi 0, %s33
      %s36 = sphi 0, %s34
      %s37 = sphi 0, %s35
      %s38 = sphi 0, %s36
      %s50 = sphi 0, %s52
      %s53 = sphi 0, %s50
      %s54 = sphi 0, %s53
      %s70 = sphi 0, %s54
      %s76 = sphi 0, %s78
      %s79 = sphi 0, %s76
      %s80 = sphi 0, %s79
      %s96 = sphi 0, %s80
    $region4: #{tpu_custom_call.1} parent=1 // loop_header_branch
      %29 = sbr.rel (%p27) target = $region8
    $region5: #{tpu_custom_call.1} parent=1 // loop_body
      %s31 = ssub.s32 %s26, 1
      %s32 = ssub.s32 %s26, 2
      %s39 = sadd.s32 1, %s34
      %p40 = scmp.ge.s32.totalorder %s39, 1
      %s41 = scalar_select %p40, 0, %s39
      %s42 = sadd.s32 1, %s33
      %s43 = scalar_select %p40, %s42, %s33
      %p44 = scmp.ge.s32.totalorder %s43, 2
      %s45 = scalar_select %p44, 0, %s43
      %s46 = sadd.s32 %s33, %s34
      %s47 = sadd.s32 %s45, %s41
      %s48 = ssub.s32 %s46, %s47
      %p49 = scmp.eq.s32.totalorder %s48, 0
      %s51 = sadd.s32 %s50, 1
      %s52 = scalar_select %p49, %s50, %s51
      %p55 = pneg %p49
      %p56 = scmp.eq.s32.totalorder %s26, 1
      %p57 = por %p55, %p56
      %p58 = scmp.ne.s32.totalorder %s50, %s53
      %p59 = scmp.eq.s32.totalorder %s26, 0
      %p60 = por %p58, %p59
      %p61 = scmp.ne.s32.totalorder %s50, %s53
      %p62 = scmp.eq.s32.totalorder %s31, 1
      %p63 = por %p61, %p62
      %p64 = scmp.ne.s32.totalorder %s53, %s54
      %p65 = scmp.eq.s32.totalorder %s31, 0
      %p66 = por %p64, %p65
      %p67 = scmp.ne.s32.totalorder %s53, %s54
      %p68 = scmp.eq.s32.totalorder %s32, 1
      %p69 = por %p67, %p68
      %p71 = scmp.ne.s32.totalorder %s54, %s70
      %p72 = scmp.eq.s32.totalorder %s32, 0
      %p73 = por %p71, %p72
      %s74 = ssub.s32 %s33, %s45
      %p75 = scmp.eq.s32.totalorder %s74, 0
      %s77 = sadd.s32 %s76, 1
      %s78 = scalar_select %p75, %s76, %s77
      %p81 = pneg %p75
      %p82 = scmp.eq.s32.totalorder %s26, 1
      %p83 = por %p81, %p82
      %p84 = scmp.ne.s32.totalorder %s76, %s79
      %p85 = scmp.eq.s32.totalorder %s26, 0
      %p86 = por %p84, %p85
      %p87 = scmp.ne.s32.totalorder %s76, %s79
      %p88 = scmp.eq.s32.totalorder %s31, 1
      %p89 = por %p87, %p88
      %p90 = scmp.ne.s32.totalorder %s79, %s80
      %p91 = scmp.eq.s32.totalorder %s31, 0
      %p92 = por %p90, %p91
      %p93 = scmp.ne.s32.totalorder %s79, %s80
      %p94 = scmp.eq.s32.totalorder %s32, 1
      %p95 = por %p93, %p94
      %p97 = scmp.ne.s32.totalorder %s80, %s96
      %p98 = scmp.eq.s32.totalorder %s32, 0
      %p99 = por %p97, %p98
      %p100 = scmp.le.s32.totalorder 1, %s26
      %p101 = scmp.lt.s32.totalorder %s26, 3
      %p102 = pnand %p100, %p101
      %p103 = pneg %p102
      // Predicated region
      $region9: #{tpu_custom_call.1} parent=5 // pred_check
        _
      $region10: #{tpu_custom_call.1} parent=5 // pred_check_branch
        %105 = sbr.rel (%p102) target = $region12
      $region11: #{tpu_custom_call.1} parent=5 // pred_region
        %s106 = ssub.s32 %s26, 1
      $region12: #{tpu_custom_call.1} parent=5 // pred_fallthru
        _
      %p107 = scmp.lt.s32.totalorder %s26, 2
      // Predicated region
      $region13: #{tpu_custom_call.1} parent=5 // pred_check
        %p108 = pneg %p107
      $region14: #{tpu_custom_call.1} parent=5 // pred_check_branch
        %110 = sbr.rel (%p108) target = $region16
      $region15: #{tpu_custom_call.1} parent=5 // pred_region
        // Predicated region
        $region17: #{tpu_custom_call.1} parent=15 // pred_check
          %p111 = pneg %p60
        $region18: #{tpu_custom_call.1} parent=15 // pred_check_branch
          %113 = sbr.rel (%p111) target = $region20
        $region19: #{tpu_custom_call.1} parent=15 // pred_region
          %s114 = sadd.s32 %s33, %s34
          %s115 = smul.u32 16, %s114
          %p116 = scmp.lt.s32.totalorder %s115, 31
          %s117 = scalar_select %p116, %s115, 31
          %s118 = smul.addr %s117, 8
          %s119 = scalar_lea.vmem %s2, %s118
          %s120 = sadd.s32 %s33, %s34
          %s121 = smul.u32 16, %s120
        $region20: #{tpu_custom_call.1} parent=15 // pred_fallthru
          _
      $region16: #{tpu_custom_call.1} parent=5 // pred_fallthru
        _
      %p122 = scmp.le.s32.totalorder 1, %s26
      %p123 = scmp.lt.s32.totalorder %s26, 3
      %p124 = pnand %p122, %p123
      %p125 = pneg %p124
      // Predicated region
      $region21: #{tpu_custom_call.1} parent=5 // pred_check
        _
      $region22: #{tpu_custom_call.1} parent=5 // pred_check_branch
        %127 = sbr.rel (%p124) target = $region24
      $region23: #{tpu_custom_call.1} parent=5 // pred_region
        %s128 = ssub.s32 %s26, 1
        %s129 = sadd.s32 %s35, %s36
        %s130 = smul.u32 16, %s129
        %p131 = scmp.lt.s32.totalorder %s130, 31
        %s132 = scalar_select %p131, %s130, 31
        %s133 = smul.addr %s132, 8
        %s134 = scalar_lea.vmem %s2, %s133
        %p135 = pneg %p66
        %p136 = pneg %p63
        %p137 = pneg %p92
        %p138 = pneg %p89
        %s139 = sand.u32 %s79, 1
        %s140 = scalar_lea.sflag [#allocation10], %s139
        %s141 = sand.u32 %s79, 1
        %s142 = scalar_lea.vmem [#allocation9], %s141
        %s143 = sadd.s32 %s35, %s36
        %s144 = smul.u32 16, %s143
        %p145 = scmp.lt.s32.totalorder %s144, 31
        %s146 = scalar_select %p145, %s144, 31
        %s147 = smul.addr %s146, 8
        %s148 = scalar_lea.vmem %s2, %s147
        %s149 = sadd.s32 %s35, %s36
        %s150 = smul.u32 16, %s149
        %p151 = scmp.eq.s32.totalorder %s36, 0
        // Predicated region
        $region25: #{tpu_custom_call.1} parent=23 // pred_check
          %p152 = pneg %p151
        $region26: #{tpu_custom_call.1} parent=23 // pred_check_branch
          %154 = sbr.rel (%p152) target = $region28
        $region27: #{tpu_custom_call.1} parent=23 // pred_region
          // Predicated region
          $region29: #{tpu_custom_call.1} parent=27 // pred_check
            _
          $region30: #{tpu_custom_call.1} parent=27 // pred_check_branch
            %156 = sbr.rel (0) target = $region32
          $region31: #{tpu_custom_call.1} parent=27 // pred_region
            loop: start=0, step=1, limit=1
            $region33: #{tpu_custom_call.1} parent=31 // loop_pre_header
              _
            $region34: #{tpu_custom_call.1} parent=31 // loop_header
              %s158 = sphi 0, %s162
              %p159 = scmp.ge.s32.totalorder %s158, 1
              %s163 = sphi %s3, %s3
              %s164 = sphi [#allocation2], [#allocation2]
            $region35: #{tpu_custom_call.1} parent=31 // loop_header_branch
              %161 = sbr.rel (%p159) target = $region39
            $region36: #{tpu_custom_call.1} parent=31 // loop_body
              %v165 = vld [vmem:[%s163] sm:$0xff]
              %166 = vst [vmem:[%s164] sm:$0xff] %v165
              %v167 = vld [vmem:[%s163 + $0x8] sm:$0xff]
              %168 = vst [vmem:[%s164 + $0x8] sm:$0xff] %v167
              %v169 = vld [vmem:[%s163 + $0x10] sm:$0xff]
              %170 = vst [vmem:[%s164 + $0x10] sm:$0xff] %v169
              %v171 = vld [vmem:[%s163 + $0x18] sm:$0xff]
              %172 = vst [vmem:[%s164 + $0x18] sm:$0xff] %v171
              %v173 = vld [vmem:[%s163 + $0x20] sm:$0xff]
              %174 = vst [vmem:[%s164 + $0x20] sm:$0xff] %v173
              %v175 = vld [vmem:[%s163 + $0x28] sm:$0xff]
              %176 = vst [vmem:[%s164 + $0x28] sm:$0xff] %v175
              %v177 = vld [vmem:[%s163 + $0x30] sm:$0xff]
              %178 = vst [vmem:[%s164 + $0x30] sm:$0xff] %v177
              %v179 = vld [vmem:[%s163 + $0x38] sm:$0xff]
              %180 = vst [vmem:[%s164 + $0x38] sm:$0xff] %v179
              %v181 = vld [vmem:[%s163 + $0x40] sm:$0xff]
              %182 = vst [vmem:[%s164 + $0x40] sm:$0xff] %v181
              %v183 = vld [vmem:[%s163 + $0x48] sm:$0xff]
              %184 = vst [vmem:[%s164 + $0x48] sm:$0xff] %v183
              %v185 = vld [vmem:[%s163 + $0x50] sm:$0xff]
              %186 = vst [vmem:[%s164 + $0x50] sm:$0xff] %v185
              %v187 = vld [vmem:[%s163 + $0x58] sm:$0xff]
              %188 = vst [vmem:[%s164 + $0x58] sm:$0xff] %v187
              %v189 = vld [vmem:[%s163 + $0x60] sm:$0xff]
              %190 = vst [vmem:[%s164 + $0x60] sm:$0xff] %v189
              %v191 = vld [vmem:[%s163 + $0x68] sm:$0xff]
              %192 = vst [vmem:[%s164 + $0x68] sm:$0xff] %v191
              %v193 = vld [vmem:[%s163 + $0x70] sm:$0xff]
              %194 = vst [vmem:[%s164 + $0x70] sm:$0xff] %v193
              %v195 = vld [vmem:[%s163 + $0x78] sm:$0xff]
              %196 = vst [vmem:[%s164 + $0x78] sm:$0xff] %v195
            $region37: #{tpu_custom_call.1} parent=31 // loop_footer
              %s162 = sadd.s32 1, %s158
            $region38: #{tpu_custom_call.1} parent=31 // loop_footer_branch
              %157 = sbr.rel target = $region34
            $region39: #{tpu_custom_call.1} parent=31 // loop_exit
              _
          $region32: #{tpu_custom_call.1} parent=27 // pred_fallthru
            _
          // Predicated region
          $region40: #{tpu_custom_call.1} parent=27 // pred_check
            _
          $region41: #{tpu_custom_call.1} parent=27 // pred_check_branch
            %198 = sbr.rel target = $region43
          $region42: #{tpu_custom_call.1} parent=27 // pred_region
            _
          $region43: #{tpu_custom_call.1} parent=27 // pred_fallthru
            _
          // Predicated region
          $region44: #{tpu_custom_call.1} parent=27 // pred_check
            _
          $region45: #{tpu_custom_call.1} parent=27 // pred_check_branch
            %201 = sbr.rel (0) target = $region47
          $region46: #{tpu_custom_call.1} parent=27 // pred_region
            %202 = vsyncadd [#allocation5], 2048
          $region47: #{tpu_custom_call.1} parent=27 // pred_fallthru
            _
          %s203 = smul.u32 128, 1
          %s204 = sshll.u32 %s203, 4
          %205 = dma.done [#allocation5], %s204
          %206 = vst [vmem:[#allocation4] sm:$0x1] 0.0
        $region28: #{tpu_custom_call.1} parent=23 // pred_fallthru
          _
        %s207 = sadd.s32 %s35, %s36
        %s208 = smul.u32 %s207, 128
        loop: start=0, step=1, limit=128
        $region48: #{tpu_custom_call.1} parent=23 // loop_pre_header
          _
        $region49: #{tpu_custom_call.1} parent=23 // loop_header
          %s210 = sphi 0, %s214
          %p211 = scmp.ge.s32.totalorder %s210, 128
        $region50: #{tpu_custom_call.1} parent=23 // loop_header_branch
          %213 = sbr.rel (%p211) target = $region54
        $region51: #{tpu_custom_call.1} parent=23 // loop_body
          %s215 = sadd.s32 %s208, %s210
          %s216 = sld [smem:[#allocation7 + %s215]]
          %s217 = sld [smem:[#allocation8 + %s215]]
          %s218 = scalar_lea.vmem [#allocation2], %s216
          %v219 = vld [vmem:[%s218] sm:$0x1]
          %s220 = scalar_lea.vmem [#allocation2], %s217
          %v221 = vld [vmem:[%s220] sm:$0x1]
          %v222 = vsub.f32 %v219, %v221
          %s223 = scalar_lea.vmem [#allocation3], %s210
          %224 = vst [vmem:[%s223] sm:$0x1] %v222
        $region52: #{tpu_custom_call.1} parent=23 // loop_footer
          %s214 = sadd.s32 1, %s210
        $region53: #{tpu_custom_call.1} parent=23 // loop_footer_branch
          %209 = sbr.rel target = $region49
        $region54: #{tpu_custom_call.1} parent=23 // loop_exit
          _
        %v225 = vld [vmem:[#allocation3] sm:$0xff]
        %v226 = vld [vmem:[#allocation3 + $0x8] sm:$0xff]
        %v227 = vld [vmem:[#allocation3 + $0x10] sm:$0xff]
        %v228 = vld [vmem:[#allocation3 + $0x18] sm:$0xff]
        %v229 = vld [vmem:[#allocation3 + $0x20] sm:$0xff]
        %v230 = vld [vmem:[#allocation3 + $0x28] sm:$0xff]
        %v231 = vld [vmem:[#allocation3 + $0x30] sm:$0xff]
        %v232 = vld [vmem:[#allocation3 + $0x38] sm:$0xff]
        %v233 = vld [vmem:[#allocation3 + $0x40] sm:$0xff]
        %v234 = vld [vmem:[#allocation3 + $0x48] sm:$0xff]
        %v235 = vld [vmem:[#allocation3 + $0x50] sm:$0xff]
        %v236 = vld [vmem:[#allocation3 + $0x58] sm:$0xff]
        %v237 = vld [vmem:[#allocation3 + $0x60] sm:$0xff]
        %v238 = vld [vmem:[#allocation3 + $0x68] sm:$0xff]
        %v239 = vld [vmem:[#allocation3 + $0x70] sm:$0xff]
        %v240 = vld [vmem:[#allocation3 + $0x78] sm:$0xff]
        %v241 = vmul.f32 %v225, %v225
        %v242 = vmul.f32 %v226, %v226
        %v243 = vmul.f32 %v227, %v227
        %v244 = vmul.f32 %v228, %v228
        %v245 = vmul.f32 %v229, %v229
        %v246 = vmul.f32 %v230, %v230
        %v247 = vmul.f32 %v231, %v231
        %v248 = vmul.f32 %v232, %v232
        %v249 = vmul.f32 %v233, %v233
        %v250 = vmul.f32 %v234, %v234
        %v251 = vmul.f32 %v235, %v235
        %v252 = vmul.f32 %v236, %v236
        %v253 = vmul.f32 %v237, %v237
        %v254 = vmul.f32 %v238, %v238
        %v255 = vmul.f32 %v239, %v239
        %v256 = vmul.f32 %v240, %v240
        %257 = vadd.xlane.f32.xlu0 %v241
        %v258 = vpop.xlane.xlu0 %257
        %259 = vadd.xlane.f32.xlu0 %v242
        %v260 = vpop.xlane.xlu0 %259
        %261 = vadd.xlane.f32.xlu0 %v243
        %v262 = vpop.xlane.xlu0 %261
        %263 = vadd.xlane.f32.xlu0 %v244
        %v264 = vpop.xlane.xlu0 %263
        %265 = vadd.xlane.f32.xlu0 %v245
        %v266 = vpop.xlane.xlu0 %265
        %267 = vadd.xlane.f32.xlu0 %v246
        %v268 = vpop.xlane.xlu0 %267
        %269 = vadd.xlane.f32.xlu0 %v247
        %v270 = vpop.xlane.xlu0 %269
        %271 = vadd.xlane.f32.xlu0 %v248
        %v272 = vpop.xlane.xlu0 %271
        %273 = vadd.xlane.f32.xlu0 %v249
        %v274 = vpop.xlane.xlu0 %273
        %275 = vadd.xlane.f32.xlu0 %v250
        %v276 = vpop.xlane.xlu0 %275
        %277 = vadd.xlane.f32.xlu0 %v251
        %v278 = vpop.xlane.xlu0 %277
        %279 = vadd.xlane.f32.xlu0 %v252
        %v280 = vpop.xlane.xlu0 %279
        %281 = vadd.xlane.f32.xlu0 %v253
        %v282 = vpop.xlane.xlu0 %281
        %283 = vadd.xlane.f32.xlu0 %v254
        %v284 = vpop.xlane.xlu0 %283
        %285 = vadd.xlane.f32.xlu0 %v255
        %v286 = vpop.xlane.xlu0 %285
        %287 = vadd.xlane.f32.xlu0 %v256
        %v288 = vpop.xlane.xlu0 %287
        %v289 = vld [vmem:[%s148] sm:$0xff]
        %v290 = vld [vmem:[%s148 + $0x8] sm:$0xff]
        %v291 = vld [vmem:[%s148 + $0x10] sm:$0xff]
        %v292 = vld [vmem:[%s148 + $0x18] sm:$0xff]
        %v293 = vld [vmem:[%s148 + $0x20] sm:$0xff]
        %v294 = vld [vmem:[%s148 + $0x28] sm:$0xff]
        %v295 = vld [vmem:[%s148 + $0x30] sm:$0xff]
        %v296 = vld [vmem:[%s148 + $0x38] sm:$0xff]
        %v297 = vld [vmem:[%s148 + $0x40] sm:$0xff]
        %v298 = vld [vmem:[%s148 + $0x48] sm:$0xff]
        %v299 = vld [vmem:[%s148 + $0x50] sm:$0xff]
        %v300 = vld [vmem:[%s148 + $0x58] sm:$0xff]
        %v301 = vld [vmem:[%s148 + $0x60] sm:$0xff]
        %v302 = vld [vmem:[%s148 + $0x68] sm:$0xff]
        %v303 = vld [vmem:[%s148 + $0x70] sm:$0xff]
        %v304 = vld [vmem:[%s148 + $0x78] sm:$0xff]
        %v305 = vlaneseq
        %v306 = vand.u32 %v305, 127
        %307 = vset.pattern.permute.xlu0 0
        %308 = vperm.xlu0 %307, %v289
        %v309 = vpop.permute.xlu0 %308
        %310 = vset.pattern.permute.xlu0 0
        %311 = vperm.xlu0 %310, %v290
        %v312 = vpop.permute.xlu0 %311
        %313 = vset.pattern.permute.xlu0 0
        %314 = vperm.xlu0 %313, %v291
        %v315 = vpop.permute.xlu0 %314
        %316 = vset.pattern.permute.xlu0 0
        %317 = vperm.xlu0 %316, %v292
        %v318 = vpop.permute.xlu0 %317
        %319 = vset.pattern.permute.xlu0 0
        %320 = vperm.xlu0 %319, %v293
        %v321 = vpop.permute.xlu0 %320
        %322 = vset.pattern.permute.xlu0 0
        %323 = vperm.xlu0 %322, %v294
        %v324 = vpop.permute.xlu0 %323
        %325 = vset.pattern.permute.xlu0 0
        %326 = vperm.xlu0 %325, %v295
        %v327 = vpop.permute.xlu0 %326
        %328 = vset.pattern.permute.xlu0 0
        %329 = vperm.xlu0 %328, %v296
        %v330 = vpop.permute.xlu0 %329
        %331 = vset.pattern.permute.xlu0 0
        %332 = vperm.xlu0 %331, %v297
        %v333 = vpop.permute.xlu0 %332
        %334 = vset.pattern.permute.xlu0 0
        %335 = vperm.xlu0 %334, %v298
        %v336 = vpop.permute.xlu0 %335
        %337 = vset.pattern.permute.xlu0 0
        %338 = vperm.xlu0 %337, %v299
        %v339 = vpop.permute.xlu0 %338
        %340 = vset.pattern.permute.xlu0 0
        %341 = vperm.xlu0 %340, %v300
        %v342 = vpop.permute.xlu0 %341
        %343 = vset.pattern.permute.xlu0 0
        %344 = vperm.xlu0 %343, %v301
        %v345 = vpop.permute.xlu0 %344
        %346 = vset.pattern.permute.xlu0 0
        %347 = vperm.xlu0 %346, %v302
        %v348 = vpop.permute.xlu0 %347
        %349 = vset.pattern.permute.xlu0 0
        %350 = vperm.xlu0 %349, %v303
        %v351 = vpop.permute.xlu0 %350
        %352 = vset.pattern.permute.xlu0 0
        %353 = vperm.xlu0 %352, %v304
        %v354 = vpop.permute.xlu0 %353
        %vm355 = vcmp.eq.s32.totalorder %v309, %v306
        %vm356 = vcmp.eq.s32.totalorder %v312, %v306
        %vm357 = vcmp.eq.s32.totalorder %v315, %v306
        %vm358 = vcmp.eq.s32.totalorder %v318, %v306
        %vm359 = vcmp.eq.s32.totalorder %v321, %v306
        %vm360 = vcmp.eq.s32.totalorder %v324, %v306
        %vm361 = vcmp.eq.s32.totalorder %v327, %v306
        %vm362 = vcmp.eq.s32.totalorder %v330, %v306
        %vm363 = vcmp.eq.s32.totalorder %v333, %v306
        %vm364 = vcmp.eq.s32.totalorder %v336, %v306
        %vm365 = vcmp.eq.s32.totalorder %v339, %v306
        %vm366 = vcmp.eq.s32.totalorder %v342, %v306
        %vm367 = vcmp.eq.s32.totalorder %v345, %v306
        %vm368 = vcmp.eq.s32.totalorder %v348, %v306
        %vm369 = vcmp.eq.s32.totalorder %v351, %v306
        %vm370 = vcmp.eq.s32.totalorder %v354, %v306
        %v371 = vsel %vm355, 1, 0
        %v372 = vsel %vm356, 1, 0
        %v373 = vsel %vm357, 1, 0
        %v374 = vsel %vm358, 1, 0
        %v375 = vsel %vm359, 1, 0
        %v376 = vsel %vm360, 1, 0
        %v377 = vsel %vm361, 1, 0
        %v378 = vsel %vm362, 1, 0
        %v379 = vsel %vm363, 1, 0
        %v380 = vsel %vm364, 1, 0
        %v381 = vsel %vm365, 1, 0
        %v382 = vsel %vm366, 1, 0
        %v383 = vsel %vm367, 1, 0
        %v384 = vsel %vm368, 1, 0
        %v385 = vsel %vm369, 1, 0
        %v386 = vsel %vm370, 1, 0
        %v387 = vcvt.s32.f32 %v371
        %v388 = vcvt.s32.f32 %v372
        %v389 = vcvt.s32.f32 %v373
        %v390 = vcvt.s32.f32 %v374
        %v391 = vcvt.s32.f32 %v375
        %v392 = vcvt.s32.f32 %v376
        %v393 = vcvt.s32.f32 %v377
        %v394 = vcvt.s32.f32 %v378
        %v395 = vcvt.s32.f32 %v379
        %v396 = vcvt.s32.f32 %v380
        %v397 = vcvt.s32.f32 %v381
        %v398 = vcvt.s32.f32 %v382
        %v399 = vcvt.s32.f32 %v383
        %v400 = vcvt.s32.f32 %v384
        %v401 = vcvt.s32.f32 %v385
        %v402 = vcvt.s32.f32 %v386
        %v403 = vld [vmem:[#allocation4] sm:$0x1]
        %v404 = vmul.f32 %v387, %v258
        %v405 = vmul.f32 %v388, %v260
        %v406 = vmul.f32 %v389, %v262
        %v407 = vmul.f32 %v390, %v264
        %v408 = vmul.f32 %v391, %v266
        %v409 = vmul.f32 %v392, %v268
        %v410 = vmul.f32 %v393, %v270
        %v411 = vmul.f32 %v394, %v272
        %v412 = vmul.f32 %v395, %v274
        %v413 = vmul.f32 %v396, %v276
        %v414 = vmul.f32 %v397, %v278
        %v415 = vmul.f32 %v398, %v280
        %v416 = vmul.f32 %v399, %v282
        %v417 = vmul.f32 %v400, %v284
        %v418 = vmul.f32 %v401, %v286
        %v419 = vmul.f32 %v402, %v288
        %v420 = vadd.f32 %v404, %v405
        %v421 = vadd.f32 %v420, %v406
        %v422 = vadd.f32 %v421, %v407
        %v423 = vadd.f32 %v422, %v408
        %v424 = vadd.f32 %v423, %v409
        %v425 = vadd.f32 %v424, %v410
        %v426 = vadd.f32 %v425, %v411
        %v427 = vadd.f32 %v426, %v412
        %v428 = vadd.f32 %v427, %v413
        %v429 = vadd.f32 %v428, %v414
        %v430 = vadd.f32 %v429, %v415
        %v431 = vadd.f32 %v430, %v416
        %v432 = vadd.f32 %v431, %v417
        %v433 = vadd.f32 %v432, %v418
        %v434 = vadd.f32 %v433, %v419
        %v435 = vrot.slane %v434, 4
        %v436 = vadd.f32 %v434, %v435
        %v437 = vrot.slane %v436, 2
        %v438 = vadd.f32 %v436, %v437
        %v439 = vrot.slane %v438, 1
        %v440 = vadd.f32 %v438, %v439
        %v441 = vadd.f32 %v403, %v440
        %442 = vst [vmem:[#allocation4] sm:$0x1] %v441
        // Predicated region
        $region55: #{tpu_custom_call.1} parent=23 // pred_check
          %p443 = pneg %p151
        $region56: #{tpu_custom_call.1} parent=23 // pred_check_branch
          %445 = sbr.rel (%p443) target = $region58
        $region57: #{tpu_custom_call.1} parent=23 // pred_region
          %v446 = vld [vmem:[#allocation4] sm:$0x1]
          %447 = vst [vmem:[%s142] sm:$0x1] %v446
        $region58: #{tpu_custom_call.1} parent=23 // pred_fallthru
          _
        %s448 = sand.u32 %s79, 1
        %s449 = scalar_lea.sflag [#allocation10], %s448
        %s450 = sand.u32 %s79, 1
        %s451 = scalar_lea.vmem [#allocation9], %s450
        // Predicated region
        $region59: #{tpu_custom_call.1} parent=23 // pred_check
          %p452 = pneg %p89
        $region60: #{tpu_custom_call.1} parent=23 // pred_check_branch
          %454 = sbr.rel (%p452) target = $region62
        $region61: #{tpu_custom_call.1} parent=23 // pred_region
          %456 = vsyncadd %s449, 0
          %s457 = scalar_lea.hbm %s4, %s35
          %s459 = sshll.u32 %s451, 4
          %s460 = int_to_ptr.vmem [resolvable:$true] %s459
          %s461 = sshll.u32 %s457, 4
          %s462 = int_to_ptr.hbm [resolvable:$true] %s461
          %464 = dma.vmem_to_hbm [thread:$0]  %s460, 16, %s462, %s449
        $region62: #{tpu_custom_call.1} parent=23 // pred_fallthru
          _
      $region24: #{tpu_custom_call.1} parent=5 // pred_fallthru
        _
      %p465 = scmp.le.s32.totalorder 2, %s26
      // Predicated region
      $region63: #{tpu_custom_call.1} parent=5 // pred_check
        %p466 = pneg %p465
      $region64: #{tpu_custom_call.1} parent=5 // pred_check_branch
        %468 = sbr.rel (%p466) target = $region66
      $region65: #{tpu_custom_call.1} parent=5 // pred_region
        %s469 = ssub.s32 %s26, 2
        // Predicated region
        $region67: #{tpu_custom_call.1} parent=65 // pred_check
          %p470 = pneg %p95
        $region68: #{tpu_custom_call.1} parent=65 // pred_check_branch
          %472 = sbr.rel (%p470) target = $region70
        $region69: #{tpu_custom_call.1} parent=65 // pred_region
          %s473 = sand.u32 %s80, 1
          %s474 = scalar_lea.sflag [#allocation10], %s473
          %s475 = sand.u32 %s80, 1
          %s476 = scalar_lea.vmem [#allocation9], %s475
          %478 = dma.done %s474, 16
        $region70: #{tpu_custom_call.1} parent=65 // pred_fallthru
          _
      $region66: #{tpu_custom_call.1} parent=5 // pred_fallthru
        _
    $region6: #{tpu_custom_call.1} parent=1 // loop_footer
      %s30 = sadd.s32 1, %s26
    $region7: #{tpu_custom_call.1} parent=1 // loop_footer_branch
      %25 = sbr.rel target = $region3
    $region8: #{tpu_custom_call.1} parent=1 // loop_exit
      _
    %479 = vsyncpa [#allocation10], 1
    %s480 = scalar_lea.sflag [#allocation10], 1
    %481 = vsyncpa %s480, 1
  %482 = vsyncmov [#allocation5]
  %s483 = vpop.sfrf %482
  %p484 = scmp.eq.s32.totalorder %s483, 0
  %p485 = pneg %p484
  %487 = shalt.err (%p485)

</llo_original>
